<compile_context>
chip_gen: v7x
topology: tpu7x:2x2x1
jax: 0.10.0
libtpu: 0.0.40
codegen_flags: <defaults>
</compile_context>

<pallas_src>
import jax
import jax.numpy as jnp
from jax.experimental import pallas as pl
from jax.experimental.pallas import tpu as pltpu


_LANE = 128
# Conservative per-buffer weight budget (bytes) across v5e/v6e/v7x; above this w1 is K-tiled.
_W1_VMEM_BUDGET = 8 * 1024 * 1024


def _round_up(x: int, m: int) -> int:
    return ((x + m - 1) // m) * m


def _mlp_head_kernel(x_ref, w1_ref, b1_ref, w2_ref, b2_ref, o_ref, h_acc):
    # x:  (TB, TK) f32/bf16   w1: (TK, Hp) bf16   b1: (1, Hp) f32
    # w2: (Hp, Cp) bf16       b2: (1, Cp) f32     o:  (TB, Cp) out_dtype
    # h_acc: (TB, Hp) f32 VMEM accumulator (persists across the K grid axis).
    k = pl.program_id(1)

    @pl.when(k == 0)
    def _():
        h_acc[...] = jnp.zeros_like(h_acc)

    # Hidden-layer partial matmul on the MXU: bf16 operands, f32 accumulation.
    x = x_ref[...].astype(jnp.bfloat16)
    h_acc[...] += jnp.dot(x, w1_ref[...], preferred_element_type=jnp.float32)

    @pl.when(k == pl.num_programs(1) - 1)
    def _():
        # bias + ReLU on the f32 accumulator.  Dropout = identity (eval mode).
        h = jnp.maximum(h_acc[...] + b1_ref[...], 0.0)
        logits = jnp.dot(h.astype(jnp.bfloat16), w2_ref[...],
                         preferred_element_type=jnp.float32)
        o_ref[...] = (logits + b2_ref[...]).astype(o_ref.dtype)


def prepare_classification_head_params(w1, b1, w2, b2):
    """One-time (init-time) weight prep: lane-dense zero-pad + bf16 cast + K-tiling choice.

    Hoisted out of the per-call path so repeated inference does not re-read f32 weights
    from HBM and re-write padded bf16 copies on every call.
    """
    D, H = w1.shape
    C = w2.shape[1]
    Hp = _round_up(H, _LANE)
    Cp = _round_up(C, _LANE)
    Dp = _round_up(D, _LANE)

    if Dp * Hp * 2 <= _W1_VMEM_BUDGET:
        tk = Dp                        # w1 fully VMEM-resident, single K step
    else:
        # Stream w1 along K (double-buffered): 2 * tk * Hp * 2B <= budget.
        tk = max(_LANE, (_W1_VMEM_BUDGET // (2 * Hp * 2)) // _LANE * _LANE)
        Dp = _round_up(Dp, tk)         # extra zero-pad so tk divides Dp exactly

    w1p = jnp.zeros((Dp, Hp), jnp.bfloat16).at[:D, :H].set(w1.astype(jnp.bfloat16))
    w2p = jnp.zeros((Hp, Cp), jnp.bfloat16).at[:H, :C].set(w2.astype(jnp.bfloat16))
    b1p = jnp.zeros((1, Hp), jnp.float32).at[0, :H].set(b1.astype(jnp.float32))
    b2p = jnp.zeros((1, Cp), jnp.float32).at[0, :C].set(b2.astype(jnp.float32))
    return {"w1": w1p, "b1": b1p, "w2": w2p, "b2": b2p, "dims": (D, H, C), "tk": tk}


def classification_head(x, params, *, block_b: int | None = None, out_dtype=None):
    """Fused MLP classification head: relu(x @ w1 + b1) @ w2 + b2 (dropout = identity).

    x      : (B, D) float32 (or bf16) activations.
    params : output of prepare_classification_head_params (pre-padded bf16 weights).
    returns logits (B, C) in out_dtype (defaults to x.dtype).
    """
    D, H, C = params["dims"]
    w1p, b1p, w2p, b2p = params["w1"], params["b1"], params["w2"], params["b2"]
    Dp, Hp = w1p.shape
    Cp = w2p.shape[1]
    TK = params["tk"]
    num_k = Dp // TK

    B = x.shape[0]
    out_dtype = x.dtype if out_dtype is None else out_dtype

    # Zero-pad x only along the K (feature) dim when needed.  K-dim padding must be zeros so
    # padded x columns times the zero-padded w1 rows contribute exactly 0 to the accumulator.
    # The batch dim is NOT padded: Pallas partial-block masking handles the last batch tile.
    if x.shape[1] != Dp:
        x_in = jnp.zeros((B, Dp), x.dtype).at[:, :D].set(x)
    else:
        x_in = x

    # Balanced batch tiles, multiples of 16 rows (bf16 sublane packing).
    # Default block_b: 512 (v6e-friendly big tiles); capped to 256 when D is large so the
    # streamed x buffers + (TB, Hp) f32 h accumulator still fit v7x's smaller VMEM.
    if block_b is None:
        block_b = 512 if Dp < 2048 else 256
    n_tiles = max(1, -(-B // block_b))                       # ceil(B / block_b)
    TB = min(_round_up(-(-B // n_tiles), 16), _round_up(B, 16))
    num_b = pl.cdiv(B, TB)

    # Resident (constant index_map) operands: single-buffered -> half the VMEM footprint.
    resident = pl.Buffered(1)
    w1_mode = pl.Buffered(1) if num_k == 1 else pl.Buffered(2)

    # Explicit scoped-VMEM budget (+50% headroom), capped at v7x's 64 MiB physical VMEM.
    x_bytes = jnp.dtype(x_in.dtype).itemsize
    o_bytes = jnp.dtype(out_dtype).itemsize
    vmem_needed = (2 * TB * TK * x_bytes                      # streamed x (double-buffered)
                   + (1 if num_k == 1 else 2) * TK * Hp * 2   # w1
                   + Hp * Cp * 2 + (Hp + Cp) * 4              # w2 + biases (single-buffered)
                   + 2 * TB * Cp * o_bytes                    # output tiles
                   + TB * Hp * 4)                             # f32 h accumulator scratch
    vmem_limit = int(min(64 << 20, max(int(vmem_needed * 1.5), 16 << 20)))

    # Megacore sharding only pays off with enough independent batch tiles; for tiny grids it
    # just duplicates the resident-weight DMA on each TensorCore.
    dim_sems = ("parallel" if num_b >= 4 else "arbitrary", "arbitrary")

    out = pl.pallas_call(
        _mlp_head_kernel,
        out_shape=jax.ShapeDtypeStruct((B, Cp), out_dtype),
        grid_spec=pltpu.PrefetchScalarGridSpec(
            num_scalar_prefetch=0,
            grid=(num_b, num_k),
            in_specs=[
                # Streamed x tile; bump to pl.Buffered(3) only if profiling shows exposed DMA.
                pl.BlockSpec((TB, TK), lambda i, k: (i, k)),
                pl.BlockSpec((TK, Hp), lambda i, k: (k, 0), pipeline_mode=w1_mode),
                pl.BlockSpec((1, Hp), lambda i, k: (0, 0), pipeline_mode=resident),
                pl.BlockSpec((Hp, Cp), lambda i, k: (0, 0), pipeline_mode=resident),
                pl.BlockSpec((1, Cp), lambda i, k: (0, 0), pipeline_mode=resident),
            ],
            out_specs=pl.BlockSpec((TB, Cp), lambda i, k: (i, 0)),
            scratch_shapes=[pltpu.VMEM((TB, Hp), jnp.float32)],
        ),
        compiler_params=pltpu.CompilerParams(
            dimension_semantics=dim_sems,
            vmem_limit_bytes=vmem_limit),
    )(x_in, w1p, b1p, w2p, b2p)

    return out[:, :C]


def _init_linear(key, fan_in, fan_out):
    """Deterministic init mimicking nn.Linear (uniform(-1/sqrt(fan_in), 1/sqrt(fan_in)))."""
    kw, kb = jax.random.split(key)
    bound = 1.0 / jnp.sqrt(fan_in)
    w = jax.random.uniform(kw, (fan_in, fan_out), jnp.float32, -bound, bound)
    b = jax.random.uniform(kb, (fan_out,), jnp.float32, -bound, bound)
    return w, b


if __name__ == "__main__":
    # Module config: input_dim=32, hidden_dim=64, num_classes=8, batch=2
    batch, input_dim, hidden_dim, num_classes = 2, 32, 64, 8

    key = jax.random.PRNGKey(0)
    kx, k1, k2 = jax.random.split(key, 3)

    x = jax.random.normal(kx, (batch, input_dim), jnp.float32)
    w1, b1 = _init_linear(k1, input_dim, hidden_dim)
    w2, b2 = _init_linear(k2, hidden_dim, num_classes)

    # One-time weight prep (hoisted out of the per-call path), then a jitted apply.
    params = prepare_classification_head_params(w1, b1, w2, b2)
    head = jax.jit(lambda xs: classification_head(xs, params))

    logits = head(x)
    jax.block_until_ready(logits)

    # Cross-check against plain-JAX f32 reference (bf16 MXU operands -> relaxed tolerance).
    ref = jnp.maximum(x @ w1 + b1, 0.0) @ w2 + b2
    assert logits.shape == (batch, num_classes)
    assert jnp.allclose(logits, ref, atol=5e-2, rtol=5e-2), (
        jnp.max(jnp.abs(logits - ref)))

    print("KERNEL_OK")
</pallas_src>

<mosaic_0001>
module attributes {stable_mosaic.version = 11 : i64} {
  func.func @_mlp_head_kernel(%arg0: i32, %arg1: i32, %arg2: memref<16x128xf32, #tpu.memory_space<vmem>>, %arg3: memref<128x128xbf16, #tpu.memory_space<vmem>>, %arg4: memref<1x128xf32, #tpu.memory_space<vmem>>, %arg5: memref<128x128xbf16, #tpu.memory_space<vmem>>, %arg6: memref<1x128xf32, #tpu.memory_space<vmem>>, %arg7: memref<16x128xf32, #tpu.memory_space<vmem>>, %arg8: memref<16x128xf32, #tpu.memory_space<vmem>>) attributes {dimension_semantics = [#tpu.dimension_semantics<arbitrary>, #tpu.dimension_semantics<arbitrary>], iteration_bounds = array<i64: 1, 1>, scalar_prefetch = 0 : i64, scratch_operands = 1 : i64, tpu.core_type = #tpu.core_type<tc>, window_params = [{transform_indices = @transform_0, window_bounds = array<i64: 16, 128>}, {pipeline_mode = #tpu.pipeline_mode<synchronous>, transform_indices = @transform_1, window_bounds = array<i64: 128, 128>}, {pipeline_mode = #tpu.pipeline_mode<synchronous>, transform_indices = @transform_2, window_bounds = array<i64: 1, 128>}, {pipeline_mode = #tpu.pipeline_mode<synchronous>, transform_indices = @transform_3, window_bounds = array<i64: 128, 128>}, {pipeline_mode = #tpu.pipeline_mode<synchronous>, transform_indices = @transform_4, window_bounds = array<i64: 1, 128>}, {transform_indices = @transform_5, window_bounds = array<i64: 16, 128>}]} {
    %c0_i32 = arith.constant 0 : i32
    %0 = arith.cmpi eq, %arg1, %c0_i32 : i32
    %1 = arith.extui %0 : i1 to i32
    %c0_i32_0 = arith.constant 0 : i32
    %2 = arith.cmpi ne, %1, %c0_i32_0 : i32
    scf.if %2 {
      %cst_10 = arith.constant 0.000000e+00 : f32
      %13 = vector.broadcast %cst_10 : f32 to vector<16x128xf32>
      %c0_11 = arith.constant 0 : index
      %c0_12 = arith.constant 0 : index
      %14 = vector.load %arg8[%c0_11, %c0_12] : memref<16x128xf32, #tpu.memory_space<vmem>>, vector<16x128xf32>
      tpu.vector_store %arg8[%c0_11, %c0_12], %13 {strides = array<i32>} : memref<16x128xf32, #tpu.memory_space<vmem>>, vector<16x128xf32>,
    } else {
    }
    %c0 = arith.constant 0 : index
    %c0_1 = arith.constant 0 : index
    %3 = vector.load %arg2[%c0, %c0_1] : memref<16x128xf32, #tpu.memory_space<vmem>>, vector<16x128xf32>
    %4 = arith.truncf %3 : vector<16x128xf32> to vector<16x128xbf16>
    %c0_2 = arith.constant 0 : index
    %c0_3 = arith.constant 0 : index
    %5 = vector.load %arg8[%c0_2, %c0_3] : memref<16x128xf32, #tpu.memory_space<vmem>>, vector<16x128xf32>
    %c0_4 = arith.constant 0 : index
    %c0_5 = arith.constant 0 : index
    %6 = vector.load %arg3[%c0_4, %c0_5] : memref<128x128xbf16, #tpu.memory_space<vmem>>, vector<128x128xbf16>
    %cst = arith.constant dense<0.000000e+00> : vector<16x128xf32>
    %7 = tpu.matmul %4, %6, %cst {dimension_numbers = #tpu.dot_dimension_numbers<[1], [0], [0], [1], [0, 0, 1, 1], [], []>} : vector<16x128xbf16>, vector<128x128xbf16>, vector<16x128xf32> -> vector<16x128xf32>
    %8 = arith.addf %5, %7 : vector<16x128xf32>
    %c0_6 = arith.constant 0 : index
    %c0_7 = arith.constant 0 : index
    %9 = vector.load %arg8[%c0_6, %c0_7] : memref<16x128xf32, #tpu.memory_space<vmem>>, vector<16x128xf32>
    tpu.vector_store %arg8[%c0_6, %c0_7], %8 {strides = array<i32>} : memref<16x128xf32, #tpu.memory_space<vmem>>, vector<16x128xf32>,
    %c0_i32_8 = arith.constant 0 : i32
    %10 = arith.cmpi eq, %arg1, %c0_i32_8 : i32
    %11 = arith.extui %10 : i1 to i32
    %c0_i32_9 = arith.constant 0 : i32
    %12 = arith.cmpi ne, %11, %c0_i32_9 : i32
    scf.if %12 {
      %c0_10 = arith.constant 0 : index
      %c0_11 = arith.constant 0 : index
      %13 = vector.load %arg8[%c0_10, %c0_11] : memref<16x128xf32, #tpu.memory_space<vmem>>, vector<16x128xf32>
      %c0_12 = arith.constant 0 : index
      %c0_13 = arith.constant 0 : index
      %14 = vector.load %arg4[%c0_12, %c0_13] : memref<1x128xf32, #tpu.memory_space<vmem>>, vector<1x128xf32>
      %15 = vector.broadcast %14 : vector<1x128xf32> to vector<16x128xf32>
      %16 = arith.addf %13, %15 : vector<16x128xf32>
      %cst_14 = arith.constant 0.000000e+00 : f32
      %17 = vector.broadcast %cst_14 : f32 to vector<16x128xf32>
      %18 = arith.maximumf %16, %17 : vector<16x128xf32>
      %19 = arith.truncf %18 : vector<16x128xf32> to vector<16x128xbf16>
      %c0_15 = arith.constant 0 : index
      %c0_16 = arith.constant 0 : index
      %20 = vector.load %arg5[%c0_15, %c0_16] : memref<128x128xbf16, #tpu.memory_space<vmem>>, vector<128x128xbf16>
      %cst_17 = arith.constant dense<0.000000e+00> : vector<16x128xf32>
      %21 = tpu.matmul %19, %20, %cst_17 {dimension_numbers = #tpu.dot_dimension_numbers<[1], [0], [0], [1], [0, 0, 1, 1], [], []>} : vector<16x128xbf16>, vector<128x128xbf16>, vector<16x128xf32> -> vector<16x128xf32>
      %c0_18 = arith.constant 0 : index
      %c0_19 = arith.constant 0 : index
      %22 = vector.load %arg6[%c0_18, %c0_19] : memref<1x128xf32, #tpu.memory_space<vmem>>, vector<1x128xf32>
      %23 = vector.broadcast %22 : vector<1x128xf32> to vector<16x128xf32>
      %24 = arith.addf %21, %23 : vector<16x128xf32>
      %c0_20 = arith.constant 0 : index
      %c0_21 = arith.constant 0 : index
      %25 = vector.load %arg7[%c0_20, %c0_21] : memref<16x128xf32, #tpu.memory_space<vmem>>, vector<16x128xf32>
      tpu.vector_store %arg7[%c0_20, %c0_21], %24 {strides = array<i32>} : memref<16x128xf32, #tpu.memory_space<vmem>>, vector<16x128xf32>,
    } else {
    }
    return
  }
  func.func @transform_0(%arg0: i32, %arg1: i32) -> (i32, i32) {
    %c0_i32 = arith.constant 0 : i32
    return %arg0, %arg1 : i32, i32
  }
  func.func @transform_1(%arg0: i32, %arg1: i32) -> (i32, i32) {
    %c0_i32 = arith.constant 0 : i32
    %c0_i32_0 = arith.constant 0 : i32
    return %arg1, %c0_i32 : i32, i32
  }
  func.func @transform_2(%arg0: i32, %arg1: i32) -> (i32, i32) {
    %c0_i32 = arith.constant 0 : i32
    %c0_i32_0 = arith.constant 0 : i32
    %c0_i32_1 = arith.constant 0 : i32
    return %c0_i32, %c0_i32_0 : i32, i32
  }
  func.func @transform_3(%arg0: i32, %arg1: i32) -> (i32, i32) {
    %c0_i32 = arith.constant 0 : i32
    %c0_i32_0 = arith.constant 0 : i32
    %c0_i32_1 = arith.constant 0 : i32
    return %c0_i32, %c0_i32_0 : i32, i32
  }
  func.func @transform_4(%arg0: i32, %arg1: i32) -> (i32, i32) {
    %c0_i32 = arith.constant 0 : i32
    %c0_i32_0 = arith.constant 0 : i32
    %c0_i32_1 = arith.constant 0 : i32
    return %c0_i32, %c0_i32_0 : i32, i32
  }
  func.func @transform_5(%arg0: i32, %arg1: i32) -> (i32, i32) {
    %c0_i32 = arith.constant 0 : i32
    %c0_i32_0 = arith.constant 0 : i32
    return %arg0, %c0_i32 : i32, i32
  }
}

</mosaic_0001>

<llo_original>
// kernel: _lambda_.1
$region0: #{_lambda_.1}
  #allocation0 [shape = 'u32[]', space=smem, size = 0x4, offset = 0x4, fixed_abs, tag = 'smem constant byte address 0x4 - core index']
  #allocation1 [shape = 'u32[144,128]{1,0:T(1,128)}', space=vmem, size = 0x12000, scoped, tag = 'internal scratch']
  #allocation2 [shape = 'f32[16,128]{1,0:T(8,128)}', space=vmem, size = 0x2000, scoped, tag = 'scratch operand']
  %s0 = inlined_call_operand.vmem [shape: f32[2,128], index: 0, kind: input, shape index: {}]
  %s1 = inlined_call_operand.hbm [shape: bf16[128,128], index: 1, kind: input, shape index: {}]
  %s2 = inlined_call_operand.vmem [shape: f32[1,128], index: 2, kind: input, shape index: {}]
  %s3 = inlined_call_operand.hbm [shape: bf16[128,128], index: 3, kind: input, shape index: {}]
  %s4 = inlined_call_operand.vmem [shape: f32[1,128], index: 4, kind: input, shape index: {}]
  %s5 = inlined_call_operand.hbm [shape: f32[2,128], index: 5, kind: output, shape index: {}]
  %s6 = sld [smem:[#allocation0]]
  $region46: #{_lambda_.1} parent=0
    _
  %s8 = ssub.s32 1, %s6
  %s9 = scalar_select 0, %s8, %s6
  $region1: #{_lambda_.1} parent=0
    #allocation3 [shape = 'u8[32768]{0}', space=vmem, size = 0x8000, scoped, tag = 'input window, operand 1, single buffered']
    #allocation4 [shape = 's32[1]{0}', space=sflag, size = 0x4, scoped, tag = 'scoped memory for _lambda_.1']
    #allocation5 [shape = 's32[1]{0}', space=sflag, size = 0x4, scoped, tag = 'scoped memory for _lambda_.1']
    #allocation6 [shape = 'u8[32768]{0}', space=vmem, size = 0x8000, scoped, tag = 'input window, operand 3, single buffered']
    #allocation7 [shape = 's32[1]{0}', space=sflag, size = 0x4, scoped, tag = 'scoped memory for _lambda_.1']
    #allocation8 [shape = 'u8[8192]{0}', space=vmem, size = 0x2000, scoped, tag = 'output window, operand 0, single buffered']
    %10 = vsyncpa [#allocation4], 0
    %11 = vsyncpa [#allocation7], 0
    %12 = vsyncpa [#allocation5], 0
    // Predicated region
    $region2: #{_lambda_.1} parent=1 // pred_check
      _
    $region3: #{_lambda_.1} parent=1 // pred_check_branch
      %14 = sbr.rel (0) target = $region5
    $region4: #{_lambda_.1} parent=1 // pred_region
      _
    $region5: #{_lambda_.1} parent=1 // pred_fallthru
      _
    // Predicated region
    $region6: #{_lambda_.1} parent=1 // pred_check
      _
    $region7: #{_lambda_.1} parent=1 // pred_check_branch
      %16 = sbr.rel (0) target = $region9
    $region8: #{_lambda_.1} parent=1 // pred_region
      %s18 = ssub.s32 1024, 1024
      %19 = vsyncadd [#allocation4], %s18
      %s20 = sshll.u32 [#allocation3], 4
      %s21 = int_to_ptr.vmem [resolvable:$true] %s20
      %26 = dma.hbm_to_vmem [thread:$0]  %s1, 1024, %s21, [#allocation4], 64, 64, 4
    $region9: #{_lambda_.1} parent=1 // pred_fallthru
      _
    // Predicated region
    $region10: #{_lambda_.1} parent=1 // pred_check
      _
    $region11: #{_lambda_.1} parent=1 // pred_check_branch
      %28 = sbr.rel (0) target = $region13
    $region12: #{_lambda_.1} parent=1 // pred_region
      _
    $region13: #{_lambda_.1} parent=1 // pred_fallthru
      _
    // Predicated region
    $region14: #{_lambda_.1} parent=1 // pred_check
      _
    $region15: #{_lambda_.1} parent=1 // pred_check_branch
      %30 = sbr.rel (0) target = $region17
    $region16: #{_lambda_.1} parent=1 // pred_region
      %s32 = ssub.s32 1024, 1024
      %33 = vsyncadd [#allocation7], %s32
      %s34 = sshll.u32 [#allocation6], 4
      %s35 = int_to_ptr.vmem [resolvable:$true] %s34
      %40 = dma.hbm_to_vmem [thread:$0]  %s3, 1024, %s35, [#allocation7], 64, 64, 4
    $region17: #{_lambda_.1} parent=1 // pred_fallthru
      _
    // Predicated region
    $region18: #{_lambda_.1} parent=1 // pred_check
      _
    $region19: #{_lambda_.1} parent=1 // pred_check_branch
      %42 = sbr.rel (0) target = $region21
    $region20: #{_lambda_.1} parent=1 // pred_region
      _
    $region21: #{_lambda_.1} parent=1 // pred_fallthru
      _
    // Predicated region
    $region22: #{_lambda_.1} parent=1 // pred_check
      _
    $region23: #{_lambda_.1} parent=1 // pred_check_branch
      %44 = sbr.rel (0) target = $region25
    $region24: #{_lambda_.1} parent=1 // pred_region
      %45 = dma.done [#allocation4], 1024
    $region25: #{_lambda_.1} parent=1 // pred_fallthru
      _
    // Predicated region
    $region26: #{_lambda_.1} parent=1 // pred_check
      _
    $region27: #{_lambda_.1} parent=1 // pred_check_branch
      %47 = sbr.rel (0) target = $region29
    $region28: #{_lambda_.1} parent=1 // pred_region
      %48 = dma.done [#allocation7], 1024
    $region29: #{_lambda_.1} parent=1 // pred_fallthru
      _
    %p50 = scmp.eq.s32.totalorder 0, 0
    // Predicated region
    $region30: #{_lambda_.1} parent=1 // pred_check
      %p51 = pneg %p50
    $region31: #{_lambda_.1} parent=1 // pred_check_branch
      %53 = sbr.rel (%p51) target = $region33
    $region32: #{_lambda_.1} parent=1 // pred_region
      %54 = vst [vmem:[#allocation2] sm:$0xff] 0.0
      %55 = vst [vmem:[#allocation2 + $0x8] sm:$0xff] 0.0
    $region33: #{_lambda_.1} parent=1 // pred_fallthru
      _
    %v56 = vld [vmem:[%s0] sm:$0xff]
    %v57 = vld [vmem:[%s0 + $0x8] sm:$0xff]
    %v58 = vpack.c.bf16 %v57, %v56
    %v59 = vld [vmem:[#allocation2] sm:$0xff]
    %v60 = vld [vmem:[#allocation2 + $0x8] sm:$0xff]
    %v61 = vld [vmem:[#allocation3] sm:$0xf]
    %v62 = vld [vmem:[#allocation3 + $0x4] sm:$0xf]
    %v63 = vld [vmem:[#allocation3 + $0x8] sm:$0xf]
    %v64 = vld [vmem:[#allocation3 + $0xc] sm:$0xf]
    %v65 = vld [vmem:[#allocation3 + $0x10] sm:$0xf]
    %v66 = vld [vmem:[#allocation3 + $0x14] sm:$0xf]
    %v67 = vld [vmem:[#allocation3 + $0x18] sm:$0xf]
    %v68 = vld [vmem:[#allocation3 + $0x1c] sm:$0xf]
    %v69 = vld [vmem:[#allocation3 + $0x20] sm:$0xf]
    %v70 = vld [vmem:[#allocation3 + $0x24] sm:$0xf]
    %v71 = vld [vmem:[#allocation3 + $0x28] sm:$0xf]
    %v72 = vld [vmem:[#allocation3 + $0x2c] sm:$0xf]
    %v73 = vld [vmem:[#allocation3 + $0x30] sm:$0xf]
    %v74 = vld [vmem:[#allocation3 + $0x34] sm:$0xf]
    %v75 = vld [vmem:[#allocation3 + $0x38] sm:$0xf]
    %v76 = vld [vmem:[#allocation3 + $0x3c] sm:$0xf]
    %v93 = vunpack.c.l.b16 %v61
    %v94 = vunpack.c.l.b16 %v62
    %v95 = vunpack.c.l.b16 %v63
    %v96 = vunpack.c.l.b16 %v64
    %v97 = vunpack.c.l.b16 %v65
    %v98 = vunpack.c.l.b16 %v66
    %v99 = vunpack.c.l.b16 %v67
    %v100 = vunpack.c.l.b16 %v68
    %v101 = vunpack.c.l.b16 %v69
    %v102 = vunpack.c.l.b16 %v70
    %v103 = vunpack.c.l.b16 %v71
    %v104 = vunpack.c.l.b16 %v72
    %v105 = vunpack.c.l.b16 %v73
    %v106 = vunpack.c.l.b16 %v74
    %v107 = vunpack.c.l.b16 %v75
    %v108 = vunpack.c.l.b16 %v76
    %v109 = vpack.c.b16 %v94, %v93
    %v110 = vpack.c.b16 %v96, %v95
    %v111 = vpack.c.b16 %v98, %v97
    %v112 = vpack.c.b16 %v100, %v99
    %v113 = vpack.c.b16 %v102, %v101
    %v114 = vpack.c.b16 %v104, %v103
    %v115 = vpack.c.b16 %v106, %v105
    %v116 = vpack.c.b16 %v108, %v107
    %125 = vmatprep.subr.bf16.mxu0 0
    %126 = vmatpush1.bf16.msra.mxu0 %v109
    %127 = vmatprep.subr.bf16.mxu0 0
    %128 = vmatpush1.bf16.msra.mxu0 %v110
    %129 = vmatprep.subr.bf16.mxu0 0
    %130 = vmatpush1.bf16.msra.mxu0 %v111
    %131 = vmatprep.subr.bf16.mxu0 0
    %132 = vmatpush1.bf16.msra.mxu0 %v112
    %133 = vmatprep.subr.bf16.mxu0 0
    %134 = vmatpush1.bf16.msra.mxu0 %v113
    %135 = vmatprep.subr.bf16.mxu0 0
    %136 = vmatpush1.bf16.msra.mxu0 %v114
    %137 = vmatprep.subr.bf16.mxu0 0
    %138 = vmatpush1.bf16.msra.mxu0 %v115
    %139 = vmatprep.subr.bf16.mxu0 0
    %140 = vmatpush1.bf16.msra.mxu0 %v116
    %141 = vmatprep.subr.bf16.mxu0 0
    %142 = vmatpush1.bf16.msra.mxu0 0
    %143 = vmatprep.subr.bf16.mxu0 0
    %144 = vmatpush1.bf16.msra.mxu0 0
    %145 = vmatprep.subr.bf16.mxu0 0
    %146 = vmatpush1.bf16.msra.mxu0 0
    %147 = vmatprep.subr.bf16.mxu0 0
    %148 = vmatpush1.bf16.msra.mxu0 0
    %149 = vmatprep.subr.bf16.mxu0 0
    %150 = vmatpush1.bf16.msra.mxu0 0
    %151 = vmatprep.subr.bf16.mxu0 0
    %152 = vmatpush1.bf16.msra.mxu0 0
    %153 = vmatprep.subr.bf16.mxu0 0
    %154 = vmatpush1.bf16.msra.mxu0 0
    %155 = vmatprep.subr.bf16.mxu0 0
    %156 = vmatpush1.bf16.msra.mxu0 0
    %157 = vmatprep.mubr.bf16.mxu0 0
    %158 = vmatmul.mubr.bf16.gmra.mrb[0].mxu0 %v58
    %v159 = vpop.f32.mrb[0].mxu0
    %v160 = vadd.f32 0.0, %v159
    %v161 = vpop.f32.mrb[0].mxu0
    %v162 = vpop.f32.mrb[0].mxu0
    %v163 = vadd.f32 0.0, %v162
    %v164 = vpop.f32.mrb[0].mxu0
    %165 = vdwg.mxu0
    %v166 = vadd.f32 %v59, %v160
    %v167 = vadd.f32 %v60, %v163
    %168 = vst [vmem:[#allocation2] sm:$0xff] %v166
    %169 = vst [vmem:[#allocation2 + $0x8] sm:$0xff] %v167
    // Predicated region
    $region34: #{_lambda_.1} parent=1 // pred_check
      %p170 = pneg %p50
    $region35: #{_lambda_.1} parent=1 // pred_check_branch
      %172 = sbr.rel (%p170) target = $region37
    $region36: #{_lambda_.1} parent=1 // pred_region
      %v173 = vld [vmem:[#allocation2] sm:$0xff]
      %v174 = vld [vmem:[#allocation2 + $0x8] sm:$0xff]
      %v175 = vld [vmem:[%s2] sm:$0x1]
      %v177 = vlaneseq
      %v178 = vshrl.u32 %v177, 7
      %v179 = vsub.s32 0, %v178
      %v180 = vrot.slane %v175, %v179
      %v182 = vadd.f32 %v173, %v180
      %v183 = vadd.f32 %v174, %v180
      %v184 = vmax.f32 %v182, 0.0
      %v185 = vmax.f32 %v183, 0.0
      %v186 = vpack.c.bf16 %v185, %v184
      %v187 = vld [vmem:[#allocation6] sm:$0xf]
      %v188 = vld [vmem:[#allocation6 + $0x4] sm:$0xf]
      %v189 = vld [vmem:[#allocation6 + $0x8] sm:$0xf]
      %v190 = vld [vmem:[#allocation6 + $0xc] sm:$0xf]
      %v191 = vld [vmem:[#allocation6 + $0x10] sm:$0xf]
      %v192 = vld [vmem:[#allocation6 + $0x14] sm:$0xf]
      %v193 = vld [vmem:[#allocation6 + $0x18] sm:$0xf]
      %v194 = vld [vmem:[#allocation6 + $0x1c] sm:$0xf]
      %v195 = vld [vmem:[#allocation6 + $0x20] sm:$0xf]
      %v196 = vld [vmem:[#allocation6 + $0x24] sm:$0xf]
      %v197 = vld [vmem:[#allocation6 + $0x28] sm:$0xf]
      %v198 = vld [vmem:[#allocation6 + $0x2c] sm:$0xf]
      %v199 = vld [vmem:[#allocation6 + $0x30] sm:$0xf]
      %v200 = vld [vmem:[#allocation6 + $0x34] sm:$0xf]
      %v201 = vld [vmem:[#allocation6 + $0x38] sm:$0xf]
      %v202 = vld [vmem:[#allocation6 + $0x3c] sm:$0xf]
      %v203 = vld [vmem:[%s4] sm:$0x1]
      %v205 = vlaneseq
      %v206 = vshrl.u32 %v205, 7
      %v207 = vsub.s32 0, %v206
      %v208 = vrot.slane %v203, %v207
      %v226 = vunpack.c.l.b16 %v187
      %v227 = vunpack.c.l.b16 %v188
      %v228 = vunpack.c.l.b16 %v189
      %v229 = vunpack.c.l.b16 %v190
      %v230 = vunpack.c.l.b16 %v191
      %v231 = vunpack.c.l.b16 %v192
      %v232 = vunpack.c.l.b16 %v193
      %v233 = vunpack.c.l.b16 %v194
      %v234 = vunpack.c.l.b16 %v195
      %v235 = vunpack.c.l.b16 %v196
      %v236 = vunpack.c.l.b16 %v197
      %v237 = vunpack.c.l.b16 %v198
      %v238 = vunpack.c.l.b16 %v199
      %v239 = vunpack.c.l.b16 %v200
      %v240 = vunpack.c.l.b16 %v201
      %v241 = vunpack.c.l.b16 %v202
      %v242 = vpack.c.b16 %v227, %v226
      %v243 = vpack.c.b16 %v229, %v228
      %v244 = vpack.c.b16 %v231, %v230
      %v245 = vpack.c.b16 %v233, %v232
      %v246 = vpack.c.b16 %v235, %v234
      %v247 = vpack.c.b16 %v237, %v236
      %v248 = vpack.c.b16 %v239, %v238
      %v249 = vpack.c.b16 %v241, %v240
      %258 = vmatprep.subr.bf16.mxu0 0
      %259 = vmatpush1.bf16.msra.mxu0 %v242
      %260 = vmatprep.subr.bf16.mxu0 0
      %261 = vmatpush1.bf16.msra.mxu0 %v243
      %262 = vmatprep.subr.bf16.mxu0 0
      %263 = vmatpush1.bf16.msra.mxu0 %v244
      %264 = vmatprep.subr.bf16.mxu0 0
      %265 = vmatpush1.bf16.msra.mxu0 %v245
      %266 = vmatprep.subr.bf16.mxu0 0
      %267 = vmatpush1.bf16.msra.mxu0 %v246
      %268 = vmatprep.subr.bf16.mxu0 0
      %269 = vmatpush1.bf16.msra.mxu0 %v247
      %270 = vmatprep.subr.bf16.mxu0 0
      %271 = vmatpush1.bf16.msra.mxu0 %v248
      %272 = vmatprep.subr.bf16.mxu0 0
      %273 = vmatpush1.bf16.msra.mxu0 %v249
      %274 = vmatprep.subr.bf16.mxu0 0
      %275 = vmatpush1.bf16.msra.mxu0 0
      %276 = vmatprep.subr.bf16.mxu0 0
      %277 = vmatpush1.bf16.msra.mxu0 0
      %278 = vmatprep.subr.bf16.mxu0 0
      %279 = vmatpush1.bf16.msra.mxu0 0
      %280 = vmatprep.subr.bf16.mxu0 0
      %281 = vmatpush1.bf16.msra.mxu0 0
      %282 = vmatprep.subr.bf16.mxu0 0
      %283 = vmatpush1.bf16.msra.mxu0 0
      %284 = vmatprep.subr.bf16.mxu0 0
      %285 = vmatpush1.bf16.msra.mxu0 0
      %286 = vmatprep.subr.bf16.mxu0 0
      %287 = vmatpush1.bf16.msra.mxu0 0
      %288 = vmatprep.subr.bf16.mxu0 0
      %289 = vmatpush1.bf16.msra.mxu0 0
      %290 = vmatprep.mubr.bf16.mxu0 0
      %291 = vmatmul.mubr.bf16.gmra.mrb[0].mxu0 %v186
      %v292 = vpop.f32.mrb[0].mxu0
      %v293 = vadd.f32 %v208, %v292
      %v294 = vpop.f32.mrb[0].mxu0
      %v295 = vpop.f32.mrb[0].mxu0
      %v296 = vadd.f32 %v208, %v295
      %v297 = vpop.f32.mrb[0].mxu0
      %298 = vdwg.mxu0
      %299 = vst [vmem:[#allocation8] sm:$0xff] %v293
      %300 = vst [vmem:[#allocation8 + $0x8] sm:$0xff] %v296
    $region37: #{_lambda_.1} parent=1 // pred_fallthru
      _
    // Predicated region
    $region38: #{_lambda_.1} parent=1 // pred_check
      _
    $region39: #{_lambda_.1} parent=1 // pred_check_branch
      %302 = sbr.rel (0) target = $region41
    $region40: #{_lambda_.1} parent=1 // pred_region
      %s304 = ssub.s32 256, 32
      %305 = vsyncadd [#allocation5], %s304
      %s306 = sshll.u32 [#allocation8], 4
      %s307 = int_to_ptr.vmem [resolvable:$true] %s306
      %312 = dma.vmem_to_hbm [thread:$0]  %s307, 32, %s5, [#allocation5], 32, 32, 2
    $region41: #{_lambda_.1} parent=1 // pred_fallthru
      _
    // Predicated region
    $region42: #{_lambda_.1} parent=1 // pred_check
      _
    $region43: #{_lambda_.1} parent=1 // pred_check_branch
      %314 = sbr.rel (0) target = $region45
    $region44: #{_lambda_.1} parent=1 // pred_region
      %315 = dma.done [#allocation5], 256
    $region45: #{_lambda_.1} parent=1 // pred_fallthru
      _
    %316 = vsyncpa [#allocation4], 1
    %317 = vsyncpa [#allocation7], 1
    %318 = vsyncpa [#allocation5], 1

</llo_original>
